<compile_context>
chip_gen: v7x
topology: tpu7x:2x2x1
jax: 0.10.0
libtpu: 0.0.40
codegen_flags: <defaults>
</compile_context>

<pallas_src>
import jax
import jax.numpy as jnp
from jax.experimental import pallas as pl
from jax.experimental.pallas import tpu as pltpu

# ---- small, module-consistent shapes ----
B = 2                # batch
VOCAB = 50           # embedding rows
VOCAB_PAD = 128      # one-hot width padded to a full vreg lane tile
EMB = 32             # embedding length (conv kernel spans the whole embedding)
MAX_LEN = 16         # sentence length
HID = 16             # hidden_num (conv out_channels)
KS = (2, 4, 6)       # kernel sizes of block1 / block3 / block5
KMAX = max(KS)       # 6
OUT = len(KS) * HID  # 48  (concatenated feature width)
BM = B * MAX_LEN     # 32  (flattened batch*time rows)
KDIM = KMAX * VOCAB_PAD   # 768  (K of the single folded matmul)


def feature_kernel(ids_ref, consts_ref, o_ref):
    """ids_ref:    (KMAX, BM, 1) int32, pre-shifted token ids, -1 where l+i >= MAX_LEN
       consts_ref: (KDIM+8, OUT) f32, rows [0,KDIM) folded conv weights, row KDIM bias
       o_ref:      (B, OUT) f32"""
    # ---- windowed one-hot: 6 broadcast-compares, concatenated along lanes ----
    iota_v = jax.lax.broadcasted_iota(jnp.int32, (BM, VOCAB_PAD), 1)
    blocks = [(iota_v == ids_ref[i]).astype(jnp.float32) for i in range(KMAX)]
    one_hot = jnp.concatenate(blocks, axis=1)                        # (BM, KDIM)

    # ---- single MXU matmul: embedding lookup + all 3 conv blocks at once ----
    acc = jnp.dot(one_hot, consts_ref[:KDIM, :],
                  preferred_element_type=jnp.float32)                # (BM, OUT)

    # ---- in-kernel validity mask + per-sample global max pool ----
    acc3 = acc.reshape(B, MAX_LEN, OUT)                              # (B, L, OUT)
    l = jax.lax.broadcasted_iota(jnp.int32, (B, MAX_LEN, OUT), 1)
    c = jax.lax.broadcasted_iota(jnp.int32, (B, MAX_LEN, OUT), 2)
    thr = jnp.where(c < HID, MAX_LEN - KS[0] + 1,
          jnp.where(c < 2 * HID, MAX_LEN - KS[1] + 1, MAX_LEN - KS[2] + 1))
    masked = jnp.where(l < thr, acc3, jnp.float32(-1e30))
    pooled = jnp.max(masked, axis=1)                                 # (B, OUT)

    # ---- bias + ReLU after the max (monotone => identical result) ----
    bias = consts_ref[KDIM:KDIM + 1, :]                              # (1, OUT)
    o_ref[...] = jnp.maximum(pooled + bias, 0.0)


@jax.jit
def feature_extractor(batch_idx, consts):
    """batch_idx: (B, 1, MAX_LEN) int32 -> feature_vec (B, 3*HID) f32."""
    # pre-shifted token ids: ids[i, b*MAX_LEN + l] = token[b, l+i] or -1 if OOB
    idx2 = batch_idx.reshape(B, MAX_LEN).astype(jnp.int32)
    padded = jnp.concatenate(
        [idx2, jnp.full((B, KMAX - 1), -1, jnp.int32)], axis=1)      # (B, MAX_LEN+5)
    ids = jnp.stack([padded[:, i:i + MAX_LEN] for i in range(KMAX)], axis=0)
    ids = ids.reshape(KMAX, BM, 1)

    vmem = pl.BlockSpec(memory_space=pltpu.MemorySpace.VMEM)
    return pl.pallas_call(
        feature_kernel,
        out_shape=jax.ShapeDtypeStruct((B, OUT), jnp.float32),
        in_specs=[vmem, vmem],
        out_specs=vmem,
        # gridless: total resident data < 0.5 MB on any generation.
    )(ids, consts)


def pack_params(emb_weight, params):
    """One-time packing: fold embedding into the conv weights, append bias row."""
    embw_pad = jnp.zeros((VOCAB_PAD, EMB), jnp.float32).at[:VOCAB].set(emb_weight)
    w_packed = jnp.zeros((KMAX, EMB, OUT), jnp.float32)
    bias = jnp.zeros((OUT,), jnp.float32)
    for j, k in enumerate(KS):
        w, b = params[2 * j], params[2 * j + 1]        # (k, EMB, HID), (1, HID)
        w_packed = w_packed.at[:k, :, j * HID:(j + 1) * HID].set(w)
        bias = bias.at[j * HID:(j + 1) * HID].set(b[0])
    # folded weight: row (i*VOCAB_PAD + v) = emb_weight[v] @ w_packed[i]
    wf = jnp.einsum('ve,keh->kvh', embw_pad, w_packed).reshape(KDIM, OUT)
    consts = jnp.zeros((KDIM + 8, OUT), jnp.float32)
    consts = consts.at[:KDIM].set(wf).at[KDIM].set(bias)
    return consts


def _reference(batch_idx, emb_weight, params):
    """Pure-JAX reference of the original (unpacked) forward pass."""
    emb = jnp.take(emb_weight, batch_idx[:, 0, :], axis=0).astype(jnp.float32)
    outs = []
    for (w, b), k in zip([(params[0], params[1]),
                          (params[2], params[3]),
                          (params[4], params[5])], KS):
        L = MAX_LEN - k + 1
        acc = jnp.zeros((B, L, HID), jnp.float32)
        for i in range(k):
            acc = acc + jnp.einsum('ble,eh->blh', emb[:, i:i + L, :], w[i])
        acc = jnp.maximum(acc + b[None, :, :], 0.0)       # bias + ReLU
        outs.append(jnp.max(acc, axis=1))                  # MaxPool1d over L
    return jnp.concatenate(outs, axis=-1)


def init_params(key):
    """Deterministic synthetic parameters (shapes from the module __init__)."""
    keys = jax.random.split(key, 8)
    emb_weight = jax.random.normal(keys[0], (VOCAB, EMB), jnp.float32)
    params = []
    for j, k in enumerate(KS):
        # torch Conv2d weight (H, 1, k, E) stored here as (k, E, H)
        w = jax.random.normal(keys[1 + 2 * j], (k, EMB, HID), jnp.float32) * 0.1
        b = jax.random.normal(keys[2 + 2 * j], (1, HID), jnp.float32) * 0.1
        params += [w, b]
    return emb_weight, tuple(params)


if __name__ == "__main__":
    key = jax.random.PRNGKey(0)
    emb_weight, params = init_params(key)
    batch_idx = jax.random.randint(
        jax.random.fold_in(key, 123), (B, 1, MAX_LEN), 0, VOCAB, dtype=jnp.int32)

    consts = pack_params(emb_weight, params)

    out = feature_extractor(batch_idx, consts)
    out = jax.block_until_ready(out)

    ref = jax.block_until_ready(_reference(batch_idx, emb_weight, params))
    assert out.shape == (B, OUT), out.shape
    assert jnp.allclose(out, ref, atol=1e-4, rtol=1e-4), "mismatch vs reference"
    print("KERNEL_OK")
</pallas_src>

<mosaic_0001>
module attributes {stable_mosaic.version = 11 : i64} {
  func.func @feature_kernel(%arg0: memref<6x32x1xi32, #tpu.memory_space<vmem>>, %arg1: memref<776x48xf32, #tpu.memory_space<vmem>>, %arg2: memref<2x48xf32, #tpu.memory_space<vmem>>) attributes {dimension_semantics = [], scalar_prefetch = 0 : i64, scratch_operands = 0 : i64, tpu.core_type = #tpu.core_type<tc>} {
    %0 = tpu.iota {dimensions = array<i32: 1>} : vector<32x128xi32>
    %c0 = arith.constant 0 : index
    %c0_0 = arith.constant 0 : index
    %c0_1 = arith.constant 0 : index
    %1 = vector.load %arg0[%c0, %c0_0, %c0_1] : memref<6x32x1xi32, #tpu.memory_space<vmem>>, vector<1x32x1xi32>
    %2 = vector.shape_cast %1 : vector<1x32x1xi32> to vector<32x1xi32>
    %3 = vector.broadcast %2 : vector<32x1xi32> to vector<32x128xi32>
    %4 = arith.cmpi eq, %0, %3 : vector<32x128xi32>
    %5 = arith.extui %4 : vector<32x128xi1> to vector<32x128xi32>
    %6 = arith.sitofp %5 : vector<32x128xi32> to vector<32x128xf32>
    %c1 = arith.constant 1 : index
    %c0_2 = arith.constant 0 : index
    %c0_3 = arith.constant 0 : index
    %7 = vector.load %arg0[%c1, %c0_2, %c0_3] : memref<6x32x1xi32, #tpu.memory_space<vmem>>, vector<1x32x1xi32>
    %8 = vector.shape_cast %7 : vector<1x32x1xi32> to vector<32x1xi32>
    %9 = vector.broadcast %8 : vector<32x1xi32> to vector<32x128xi32>
    %10 = arith.cmpi eq, %0, %9 : vector<32x128xi32>
    %11 = arith.extui %10 : vector<32x128xi1> to vector<32x128xi32>
    %12 = arith.sitofp %11 : vector<32x128xi32> to vector<32x128xf32>
    %c2 = arith.constant 2 : index
    %c0_4 = arith.constant 0 : index
    %c0_5 = arith.constant 0 : index
    %13 = vector.load %arg0[%c2, %c0_4, %c0_5] : memref<6x32x1xi32, #tpu.memory_space<vmem>>, vector<1x32x1xi32>
    %14 = vector.shape_cast %13 : vector<1x32x1xi32> to vector<32x1xi32>
    %15 = vector.broadcast %14 : vector<32x1xi32> to vector<32x128xi32>
    %16 = arith.cmpi eq, %0, %15 : vector<32x128xi32>
    %17 = arith.extui %16 : vector<32x128xi1> to vector<32x128xi32>
    %18 = arith.sitofp %17 : vector<32x128xi32> to vector<32x128xf32>
    %c3 = arith.constant 3 : index
    %c0_6 = arith.constant 0 : index
    %c0_7 = arith.constant 0 : index
    %19 = vector.load %arg0[%c3, %c0_6, %c0_7] : memref<6x32x1xi32, #tpu.memory_space<vmem>>, vector<1x32x1xi32>
    %20 = vector.shape_cast %19 : vector<1x32x1xi32> to vector<32x1xi32>
    %21 = vector.broadcast %20 : vector<32x1xi32> to vector<32x128xi32>
    %22 = arith.cmpi eq, %0, %21 : vector<32x128xi32>
    %23 = arith.extui %22 : vector<32x128xi1> to vector<32x128xi32>
    %24 = arith.sitofp %23 : vector<32x128xi32> to vector<32x128xf32>
    %c4 = arith.constant 4 : index
    %c0_8 = arith.constant 0 : index
    %c0_9 = arith.constant 0 : index
    %25 = vector.load %arg0[%c4, %c0_8, %c0_9] : memref<6x32x1xi32, #tpu.memory_space<vmem>>, vector<1x32x1xi32>
    %26 = vector.shape_cast %25 : vector<1x32x1xi32> to vector<32x1xi32>
    %27 = vector.broadcast %26 : vector<32x1xi32> to vector<32x128xi32>
    %28 = arith.cmpi eq, %0, %27 : vector<32x128xi32>
    %29 = arith.extui %28 : vector<32x128xi1> to vector<32x128xi32>
    %30 = arith.sitofp %29 : vector<32x128xi32> to vector<32x128xf32>
    %c5 = arith.constant 5 : index
    %c0_10 = arith.constant 0 : index
    %c0_11 = arith.constant 0 : index
    %31 = vector.load %arg0[%c5, %c0_10, %c0_11] : memref<6x32x1xi32, #tpu.memory_space<vmem>>, vector<1x32x1xi32>
    %32 = vector.shape_cast %31 : vector<1x32x1xi32> to vector<32x1xi32>
    %33 = vector.broadcast %32 : vector<32x1xi32> to vector<32x128xi32>
    %34 = arith.cmpi eq, %0, %33 : vector<32x128xi32>
    %35 = arith.extui %34 : vector<32x128xi1> to vector<32x128xi32>
    %36 = arith.sitofp %35 : vector<32x128xi32> to vector<32x128xf32>
    %37 = tpu.concatenate %6, %12, %18, %24, %30, %36 in 1 : vector<32x128xf32>, vector<32x128xf32>, vector<32x128xf32>, vector<32x128xf32>, vector<32x128xf32>, vector<32x128xf32> -> vector<32x768xf32>
    %c0_12 = arith.constant 0 : index
    %c0_13 = arith.constant 0 : index
    %38 = vector.load %arg1[%c0_12, %c0_13] : memref<776x48xf32, #tpu.memory_space<vmem>>, vector<768x48xf32>
    %cst = arith.constant dense<0.000000e+00> : vector<32x48xf32>
    %39 = tpu.matmul %37, %38, %cst {dimension_numbers = #tpu.dot_dimension_numbers<[1], [0], [0], [1], [0, 0, 1, 1], [], []>} : vector<32x768xf32>, vector<768x48xf32>, vector<32x48xf32> -> vector<32x48xf32>
    %40 = vector.shape_cast %39 : vector<32x48xf32> to vector<2x16x48xf32>
    %41 = tpu.iota {dimensions = array<i32: 1>} : vector<2x16x48xi32>
    %42 = tpu.iota {dimensions = array<i32: 2>} : vector<2x16x48xi32>
    %c16_i32 = arith.constant 16 : i32
    %43 = vector.broadcast %c16_i32 : i32 to vector<2x16x48xi32>
    %44 = arith.cmpi slt, %42, %43 : vector<2x16x48xi32>
    %c32_i32 = arith.constant 32 : i32
    %45 = vector.broadcast %c32_i32 : i32 to vector<2x16x48xi32>
    %46 = arith.cmpi slt, %42, %45 : vector<2x16x48xi32>
    %c13_i32 = arith.constant 13 : i32
    %c11_i32 = arith.constant 11 : i32
    %47 = vector.broadcast %c13_i32 : i32 to vector<2x16x48xi32>
    %48 = vector.broadcast %c11_i32 : i32 to vector<2x16x48xi32>
    %49 = arith.select %46, %47, %48 : vector<2x16x48xi1>, vector<2x16x48xi32>
    %c15_i32 = arith.constant 15 : i32
    %50 = vector.broadcast %c15_i32 : i32 to vector<2x16x48xi32>
    %51 = arith.select %44, %50, %49 : vector<2x16x48xi1>, vector<2x16x48xi32>
    %52 = arith.cmpi slt, %41, %51 : vector<2x16x48xi32>
    %cst_14 = arith.constant -1.000000e+30 : f32
    %53 = vector.broadcast %cst_14 : f32 to vector<2x16x48xf32>
    %54 = arith.select %52, %40, %53 : vector<2x16x48xi1>, vector<2x16x48xf32>
    %cst_15 = arith.constant dense<0xFF800000> : vector<2x48xf32>
    %55 = vector.multi_reduction <maximumf>, %54, %cst_15 [1] : vector<2x16x48xf32> to vector<2x48xf32>
    %c768 = arith.constant 768 : index
    %c0_16 = arith.constant 0 : index
    %56 = vector.load %arg1[%c768, %c0_16] : memref<776x48xf32, #tpu.memory_space<vmem>>, vector<1x48xf32>
    %57 = vector.broadcast %56 : vector<1x48xf32> to vector<2x48xf32>
    %58 = arith.addf %55, %57 : vector<2x48xf32>
    %cst_17 = arith.constant 0.000000e+00 : f32
    %59 = vector.broadcast %cst_17 : f32 to vector<2x48xf32>
    %60 = arith.maximumf %58, %59 : vector<2x48xf32>
    %c0_18 = arith.constant 0 : index
    %c0_19 = arith.constant 0 : index
    %61 = vector.load %arg2[%c0_18, %c0_19] : memref<2x48xf32, #tpu.memory_space<vmem>>, vector<2x48xf32>
    tpu.vector_store %arg2[%c0_18, %c0_19], %60 {strides = array<i32>} : memref<2x48xf32, #tpu.memory_space<vmem>>, vector<2x48xf32>,
    return
  }
}

</mosaic_0001>

<llo_original>
// kernel: feature_extractor.1
$region0: #{feature_extractor.1}
  #allocation0 [shape = 'u32[]', space=smem, size = 0x4, offset = 0x4, fixed_abs, tag = 'smem constant byte address 0x4 - core index']
  #allocation1 [shape = 'u32[144,128]{1,0:T(1,128)}', space=vmem, size = 0x12000, scoped, tag = 'internal scratch']
  %s0 = inlined_call_operand.vmem [shape: s32[6,32,1], index: 0, kind: input, shape index: {}]
  %s1 = inlined_call_operand.vmem [shape: f32[776,48], index: 1, kind: input, shape index: {}]
  %s2 = inlined_call_operand.hbm [shape: f32[2,48], index: 2, kind: output, shape index: {}]
  %s3 = sld [smem:[#allocation0]]
  $region18: #{feature_extractor.1} parent=0
    _
  %s5 = ssub.s32 1, %s3
  %s6 = scalar_select 0, %s5, %s3
  $region1: #{feature_extractor.1} parent=0
    #allocation2 [shape = 'u8[1024]{0}', space=vmem, size = 0x400, scoped, tag = 'output window, operand 0, single buffered']
    #allocation3 [shape = 's32[1]{0}', space=sflag, size = 0x4, scoped, tag = 'scoped memory for feature_extractor.1']
    %7 = vsyncpa [#allocation3], 0
    // Predicated region
    $region2: #{feature_extractor.1} parent=1 // pred_check
      _
    $region3: #{feature_extractor.1} parent=1 // pred_check_branch
      %9 = sbr.rel (0) target = $region5
    $region4: #{feature_extractor.1} parent=1 // pred_region
      _
    $region5: #{feature_extractor.1} parent=1 // pred_fallthru
      _
    // Predicated region
    $region6: #{feature_extractor.1} parent=1 // pred_check
      _
    $region7: #{feature_extractor.1} parent=1 // pred_check_branch
      %11 = sbr.rel (0) target = $region9
    $region8: #{feature_extractor.1} parent=1 // pred_region
      _
    $region9: #{feature_extractor.1} parent=1 // pred_fallthru
      _
    %v12 = vlaneseq
    %v13 = vand.u32 %v12, 127
    %v14 = vld [vmem:[%s0] sm:$0xff]
    %v15 = vld [vmem:[%s0 + $0x8] sm:$0xff]
    %v16 = vld [vmem:[%s0 + $0x10] sm:$0xff]
    %v17 = vld [vmem:[%s0 + $0x18] sm:$0xff]
    %18 = vset.pattern.permute.xlu0 0
    %19 = vperm.xlu0 %18, %v14
    %v20 = vpop.permute.xlu0 %19
    %21 = vset.pattern.permute.xlu0 0
    %22 = vperm.xlu0 %21, %v15
    %v23 = vpop.permute.xlu0 %22
    %24 = vset.pattern.permute.xlu0 0
    %25 = vperm.xlu0 %24, %v16
    %v26 = vpop.permute.xlu0 %25
    %27 = vset.pattern.permute.xlu0 0
    %28 = vperm.xlu0 %27, %v17
    %v29 = vpop.permute.xlu0 %28
    %vm30 = vcmp.eq.s32.totalorder %v13, %v20
    %vm31 = vcmp.eq.s32.totalorder %v13, %v23
    %vm32 = vcmp.eq.s32.totalorder %v13, %v26
    %vm33 = vcmp.eq.s32.totalorder %v13, %v29
    %v34 = vsel %vm30, 1, 0
    %v35 = vsel %vm31, 1, 0
    %v36 = vsel %vm32, 1, 0
    %v37 = vsel %vm33, 1, 0
    %v38 = vcvt.s32.f32 %v34
    %v39 = vcvt.s32.f32 %v35
    %v40 = vcvt.s32.f32 %v36
    %v41 = vcvt.s32.f32 %v37
    %s42 = scalar_lea.vmem %s0, 32
    %v43 = vld [vmem:[%s42] sm:$0xff]
    %v44 = vld [vmem:[%s42 + $0x8] sm:$0xff]
    %v45 = vld [vmem:[%s42 + $0x10] sm:$0xff]
    %v46 = vld [vmem:[%s42 + $0x18] sm:$0xff]
    %47 = vset.pattern.permute.xlu0 0
    %48 = vperm.xlu0 %47, %v43
    %v49 = vpop.permute.xlu0 %48
    %50 = vset.pattern.permute.xlu0 0
    %51 = vperm.xlu0 %50, %v44
    %v52 = vpop.permute.xlu0 %51
    %53 = vset.pattern.permute.xlu0 0
    %54 = vperm.xlu0 %53, %v45
    %v55 = vpop.permute.xlu0 %54
    %56 = vset.pattern.permute.xlu0 0
    %57 = vperm.xlu0 %56, %v46
    %v58 = vpop.permute.xlu0 %57
    %vm59 = vcmp.eq.s32.totalorder %v13, %v49
    %vm60 = vcmp.eq.s32.totalorder %v13, %v52
    %vm61 = vcmp.eq.s32.totalorder %v13, %v55
    %vm62 = vcmp.eq.s32.totalorder %v13, %v58
    %v63 = vsel %vm59, 1, 0
    %v64 = vsel %vm60, 1, 0
    %v65 = vsel %vm61, 1, 0
    %v66 = vsel %vm62, 1, 0
    %v67 = vcvt.s32.f32 %v63
    %v68 = vcvt.s32.f32 %v64
    %v69 = vcvt.s32.f32 %v65
    %v70 = vcvt.s32.f32 %v66
    %s71 = scalar_lea.vmem %s0, 64
    %v72 = vld [vmem:[%s71] sm:$0xff]
    %v73 = vld [vmem:[%s71 + $0x8] sm:$0xff]
    %v74 = vld [vmem:[%s71 + $0x10] sm:$0xff]
    %v75 = vld [vmem:[%s71 + $0x18] sm:$0xff]
    %76 = vset.pattern.permute.xlu0 0
    %77 = vperm.xlu0 %76, %v72
    %v78 = vpop.permute.xlu0 %77
    %79 = vset.pattern.permute.xlu0 0
    %80 = vperm.xlu0 %79, %v73
    %v81 = vpop.permute.xlu0 %80
    %82 = vset.pattern.permute.xlu0 0
    %83 = vperm.xlu0 %82, %v74
    %v84 = vpop.permute.xlu0 %83
    %85 = vset.pattern.permute.xlu0 0
    %86 = vperm.xlu0 %85, %v75
    %v87 = vpop.permute.xlu0 %86
    %vm88 = vcmp.eq.s32.totalorder %v13, %v78
    %vm89 = vcmp.eq.s32.totalorder %v13, %v81
    %vm90 = vcmp.eq.s32.totalorder %v13, %v84
    %vm91 = vcmp.eq.s32.totalorder %v13, %v87
    %v92 = vsel %vm88, 1, 0
    %v93 = vsel %vm89, 1, 0
    %v94 = vsel %vm90, 1, 0
    %v95 = vsel %vm91, 1, 0
    %v96 = vcvt.s32.f32 %v92
    %v97 = vcvt.s32.f32 %v93
    %v98 = vcvt.s32.f32 %v94
    %v99 = vcvt.s32.f32 %v95
    %s100 = scalar_lea.vmem %s0, 96
    %v101 = vld [vmem:[%s100] sm:$0xff]
    %v102 = vld [vmem:[%s100 + $0x8] sm:$0xff]
    %v103 = vld [vmem:[%s100 + $0x10] sm:$0xff]
    %v104 = vld [vmem:[%s100 + $0x18] sm:$0xff]
    %105 = vset.pattern.permute.xlu0 0
    %106 = vperm.xlu0 %105, %v101
    %v107 = vpop.permute.xlu0 %106
    %108 = vset.pattern.permute.xlu0 0
    %109 = vperm.xlu0 %108, %v102
    %v110 = vpop.permute.xlu0 %109
    %111 = vset.pattern.permute.xlu0 0
    %112 = vperm.xlu0 %111, %v103
    %v113 = vpop.permute.xlu0 %112
    %114 = vset.pattern.permute.xlu0 0
    %115 = vperm.xlu0 %114, %v104
    %v116 = vpop.permute.xlu0 %115
    %vm117 = vcmp.eq.s32.totalorder %v13, %v107
    %vm118 = vcmp.eq.s32.totalorder %v13, %v110
    %vm119 = vcmp.eq.s32.totalorder %v13, %v113
    %vm120 = vcmp.eq.s32.totalorder %v13, %v116
    %v121 = vsel %vm117, 1, 0
    %v122 = vsel %vm118, 1, 0
    %v123 = vsel %vm119, 1, 0
    %v124 = vsel %vm120, 1, 0
    %v125 = vcvt.s32.f32 %v121
    %v126 = vcvt.s32.f32 %v122
    %v127 = vcvt.s32.f32 %v123
    %v128 = vcvt.s32.f32 %v124
    %s129 = scalar_lea.vmem %s0, 128
    %v130 = vld [vmem:[%s129] sm:$0xff]
    %v131 = vld [vmem:[%s129 + $0x8] sm:$0xff]
    %v132 = vld [vmem:[%s129 + $0x10] sm:$0xff]
    %v133 = vld [vmem:[%s129 + $0x18] sm:$0xff]
    %134 = vset.pattern.permute.xlu0 0
    %135 = vperm.xlu0 %134, %v130
    %v136 = vpop.permute.xlu0 %135
    %137 = vset.pattern.permute.xlu0 0
    %138 = vperm.xlu0 %137, %v131
    %v139 = vpop.permute.xlu0 %138
    %140 = vset.pattern.permute.xlu0 0
    %141 = vperm.xlu0 %140, %v132
    %v142 = vpop.permute.xlu0 %141
    %143 = vset.pattern.permute.xlu0 0
    %144 = vperm.xlu0 %143, %v133
    %v145 = vpop.permute.xlu0 %144
    %vm146 = vcmp.eq.s32.totalorder %v13, %v136
    %vm147 = vcmp.eq.s32.totalorder %v13, %v139
    %vm148 = vcmp.eq.s32.totalorder %v13, %v142
    %vm149 = vcmp.eq.s32.totalorder %v13, %v145
    %v150 = vsel %vm146, 1, 0
    %v151 = vsel %vm147, 1, 0
    %v152 = vsel %vm148, 1, 0
    %v153 = vsel %vm149, 1, 0
    %v154 = vcvt.s32.f32 %v150
    %v155 = vcvt.s32.f32 %v151
    %v156 = vcvt.s32.f32 %v152
    %v157 = vcvt.s32.f32 %v153
    %s158 = scalar_lea.vmem %s0, 160
    %v159 = vld [vmem:[%s158] sm:$0xff]
    %v160 = vld [vmem:[%s158 + $0x8] sm:$0xff]
    %v161 = vld [vmem:[%s158 + $0x10] sm:$0xff]
    %v162 = vld [vmem:[%s158 + $0x18] sm:$0xff]
    %163 = vset.pattern.permute.xlu0 0
    %164 = vperm.xlu0 %163, %v159
    %v165 = vpop.permute.xlu0 %164
    %166 = vset.pattern.permute.xlu0 0
    %167 = vperm.xlu0 %166, %v160
    %v168 = vpop.permute.xlu0 %167
    %169 = vset.pattern.permute.xlu0 0
    %170 = vperm.xlu0 %169, %v161
    %v171 = vpop.permute.xlu0 %170
    %172 = vset.pattern.permute.xlu0 0
    %173 = vperm.xlu0 %172, %v162
    %v174 = vpop.permute.xlu0 %173
    %vm175 = vcmp.eq.s32.totalorder %v13, %v165
    %vm176 = vcmp.eq.s32.totalorder %v13, %v168
    %vm177 = vcmp.eq.s32.totalorder %v13, %v171
    %vm178 = vcmp.eq.s32.totalorder %v13, %v174
    %v179 = vsel %vm175, 1, 0
    %v180 = vsel %vm176, 1, 0
    %v181 = vsel %vm177, 1, 0
    %v182 = vsel %vm178, 1, 0
    %v183 = vcvt.s32.f32 %v179
    %v184 = vcvt.s32.f32 %v180
    %v185 = vcvt.s32.f32 %v181
    %v186 = vcvt.s32.f32 %v182
    %v187 = vld [vmem:[%s1] sm:$0xff]
    %v188 = vld [vmem:[%s1 + $0x8] sm:$0xff]
    %v189 = vld [vmem:[%s1 + $0x10] sm:$0xff]
    %v190 = vld [vmem:[%s1 + $0x18] sm:$0xff]
    %v191 = vld [vmem:[%s1 + $0x20] sm:$0xff]
    %v192 = vld [vmem:[%s1 + $0x28] sm:$0xff]
    %v193 = vld [vmem:[%s1 + $0x30] sm:$0xff]
    %v194 = vld [vmem:[%s1 + $0x38] sm:$0xff]
    %v195 = vld [vmem:[%s1 + $0x40] sm:$0xff]
    %v196 = vld [vmem:[%s1 + $0x48] sm:$0xff]
    %v197 = vld [vmem:[%s1 + $0x50] sm:$0xff]
    %v198 = vld [vmem:[%s1 + $0x58] sm:$0xff]
    %v199 = vld [vmem:[%s1 + $0x60] sm:$0xff]
    %v200 = vld [vmem:[%s1 + $0x68] sm:$0xff]
    %v201 = vld [vmem:[%s1 + $0x70] sm:$0xff]
    %v202 = vld [vmem:[%s1 + $0x78] sm:$0xff]
    %v203 = vld [vmem:[%s1 + $0x80] sm:$0xff]
    %v204 = vld [vmem:[%s1 + $0x88] sm:$0xff]
    %v205 = vld [vmem:[%s1 + $0x90] sm:$0xff]
    %v206 = vld [vmem:[%s1 + $0x98] sm:$0xff]
    %v207 = vld [vmem:[%s1 + $0xa0] sm:$0xff]
    %v208 = vld [vmem:[%s1 + $0xa8] sm:$0xff]
    %v209 = vld [vmem:[%s1 + $0xb0] sm:$0xff]
    %v210 = vld [vmem:[%s1 + $0xb8] sm:$0xff]
    %v211 = vld [vmem:[%s1 + $0xc0] sm:$0xff]
    %v212 = vld [vmem:[%s1 + $0xc8] sm:$0xff]
    %v213 = vld [vmem:[%s1 + $0xd0] sm:$0xff]
    %v214 = vld [vmem:[%s1 + $0xd8] sm:$0xff]
    %v215 = vld [vmem:[%s1 + $0xe0] sm:$0xff]
    %v216 = vld [vmem:[%s1 + $0xe8] sm:$0xff]
    %v217 = vld [vmem:[%s1 + $0xf0] sm:$0xff]
    %v218 = vld [vmem:[%s1 + $0xf8] sm:$0xff]
    %v219 = vld [vmem:[%s1 + $0x100] sm:$0xff]
    %v220 = vld [vmem:[%s1 + $0x108] sm:$0xff]
    %v221 = vld [vmem:[%s1 + $0x110] sm:$0xff]
    %v222 = vld [vmem:[%s1 + $0x118] sm:$0xff]
    %v223 = vld [vmem:[%s1 + $0x120] sm:$0xff]
    %v224 = vld [vmem:[%s1 + $0x128] sm:$0xff]
    %v225 = vld [vmem:[%s1 + $0x130] sm:$0xff]
    %v226 = vld [vmem:[%s1 + $0x138] sm:$0xff]
    %v227 = vld [vmem:[%s1 + $0x140] sm:$0xff]
    %v228 = vld [vmem:[%s1 + $0x148] sm:$0xff]
    %v229 = vld [vmem:[%s1 + $0x150] sm:$0xff]
    %v230 = vld [vmem:[%s1 + $0x158] sm:$0xff]
    %v231 = vld [vmem:[%s1 + $0x160] sm:$0xff]
    %v232 = vld [vmem:[%s1 + $0x168] sm:$0xff]
    %v233 = vld [vmem:[%s1 + $0x170] sm:$0xff]
    %v234 = vld [vmem:[%s1 + $0x178] sm:$0xff]
    %v235 = vld [vmem:[%s1 + $0x180] sm:$0xff]
    %v236 = vld [vmem:[%s1 + $0x188] sm:$0xff]
    %v237 = vld [vmem:[%s1 + $0x190] sm:$0xff]
    %v238 = vld [vmem:[%s1 + $0x198] sm:$0xff]
    %v239 = vld [vmem:[%s1 + $0x1a0] sm:$0xff]
    %v240 = vld [vmem:[%s1 + $0x1a8] sm:$0xff]
    %v241 = vld [vmem:[%s1 + $0x1b0] sm:$0xff]
    %v242 = vld [vmem:[%s1 + $0x1b8] sm:$0xff]
    %v243 = vld [vmem:[%s1 + $0x1c0] sm:$0xff]
    %v244 = vld [vmem:[%s1 + $0x1c8] sm:$0xff]
    %v245 = vld [vmem:[%s1 + $0x1d0] sm:$0xff]
    %v246 = vld [vmem:[%s1 + $0x1d8] sm:$0xff]
    %v247 = vld [vmem:[%s1 + $0x1e0] sm:$0xff]
    %v248 = vld [vmem:[%s1 + $0x1e8] sm:$0xff]
    %v249 = vld [vmem:[%s1 + $0x1f0] sm:$0xff]
    %v250 = vld [vmem:[%s1 + $0x1f8] sm:$0xff]
    %v251 = vld [vmem:[%s1 + $0x200] sm:$0xff]
    %v252 = vld [vmem:[%s1 + $0x208] sm:$0xff]
    %v253 = vld [vmem:[%s1 + $0x210] sm:$0xff]
    %v254 = vld [vmem:[%s1 + $0x218] sm:$0xff]
    %v255 = vld [vmem:[%s1 + $0x220] sm:$0xff]
    %v256 = vld [vmem:[%s1 + $0x228] sm:$0xff]
    %v257 = vld [vmem:[%s1 + $0x230] sm:$0xff]
    %v258 = vld [vmem:[%s1 + $0x238] sm:$0xff]
    %v259 = vld [vmem:[%s1 + $0x240] sm:$0xff]
    %v260 = vld [vmem:[%s1 + $0x248] sm:$0xff]
    %v261 = vld [vmem:[%s1 + $0x250] sm:$0xff]
    %v262 = vld [vmem:[%s1 + $0x258] sm:$0xff]
    %v263 = vld [vmem:[%s1 + $0x260] sm:$0xff]
    %v264 = vld [vmem:[%s1 + $0x268] sm:$0xff]
    %v265 = vld [vmem:[%s1 + $0x270] sm:$0xff]
    %v266 = vld [vmem:[%s1 + $0x278] sm:$0xff]
    %v267 = vld [vmem:[%s1 + $0x280] sm:$0xff]
    %v268 = vld [vmem:[%s1 + $0x288] sm:$0xff]
    %v269 = vld [vmem:[%s1 + $0x290] sm:$0xff]
    %v270 = vld [vmem:[%s1 + $0x298] sm:$0xff]
    %v271 = vld [vmem:[%s1 + $0x2a0] sm:$0xff]
    %v272 = vld [vmem:[%s1 + $0x2a8] sm:$0xff]
    %v273 = vld [vmem:[%s1 + $0x2b0] sm:$0xff]
    %v274 = vld [vmem:[%s1 + $0x2b8] sm:$0xff]
    %v275 = vld [vmem:[%s1 + $0x2c0] sm:$0xff]
    %v276 = vld [vmem:[%s1 + $0x2c8] sm:$0xff]
    %v277 = vld [vmem:[%s1 + $0x2d0] sm:$0xff]
    %v278 = vld [vmem:[%s1 + $0x2d8] sm:$0xff]
    %v279 = vld [vmem:[%s1 + $0x2e0] sm:$0xff]
    %v280 = vld [vmem:[%s1 + $0x2e8] sm:$0xff]
    %v281 = vld [vmem:[%s1 + $0x2f0] sm:$0xff]
    %v282 = vld [vmem:[%s1 + $0x2f8] sm:$0xff]
    %283 = vmatprep.subr.mxu0 0.0
    %284 = vmatpush1.msra.mxu0 %v187
    %285 = vmatprep.subr.mxu0 0.0
    %286 = vmatpush1.msra.mxu0 %v188
    %287 = vmatprep.subr.mxu0 0.0
    %288 = vmatpush1.msra.mxu0 %v189
    %289 = vmatprep.subr.mxu0 0.0
    %290 = vmatpush1.msra.mxu0 %v190
    %291 = vmatprep.subr.mxu0 0.0
    %292 = vmatpush1.msra.mxu0 %v191
    %293 = vmatprep.subr.mxu0 0.0
    %294 = vmatpush1.msra.mxu0 %v192
    %295 = vmatprep.subr.mxu0 0.0
    %296 = vmatpush1.msra.mxu0 %v193
    %297 = vmatprep.subr.mxu0 0.0
    %298 = vmatpush1.msra.mxu0 %v194
    %299 = vmatprep.subr.mxu0 0.0
    %300 = vmatpush1.msra.mxu0 %v195
    %301 = vmatprep.subr.mxu0 0.0
    %302 = vmatpush1.msra.mxu0 %v196
    %303 = vmatprep.subr.mxu0 0.0
    %304 = vmatpush1.msra.mxu0 %v197
    %305 = vmatprep.subr.mxu0 0.0
    %306 = vmatpush1.msra.mxu0 %v198
    %307 = vmatprep.subr.mxu0 0.0
    %308 = vmatpush1.msra.mxu0 %v199
    %309 = vmatprep.subr.mxu0 0.0
    %310 = vmatpush1.msra.mxu0 %v200
    %311 = vmatprep.subr.mxu0 0.0
    %312 = vmatpush1.msra.mxu0 %v201
    %313 = vmatprep.subr.mxu0 0.0
    %314 = vmatpush1.msra.mxu0 %v202
    %315 = vmatprep.subr.mxu0 0.0
    %316 = vmatpush1.msra.mxu0 %v203
    %317 = vmatprep.subr.mxu0 0.0
    %318 = vmatpush1.msra.mxu0 %v204
    %319 = vmatprep.subr.mxu0 0.0
    %320 = vmatpush1.msra.mxu0 %v205
    %321 = vmatprep.subr.mxu0 0.0
    %322 = vmatpush1.msra.mxu0 %v206
    %323 = vmatprep.subr.mxu0 0.0
    %324 = vmatpush1.msra.mxu0 %v207
    %325 = vmatprep.subr.mxu0 0.0
    %326 = vmatpush1.msra.mxu0 %v208
    %327 = vmatprep.subr.mxu0 0.0
    %328 = vmatpush1.msra.mxu0 %v209
    %329 = vmatprep.subr.mxu0 0.0
    %330 = vmatpush1.msra.mxu0 %v210
    %331 = vmatprep.subr.mxu0 0.0
    %332 = vmatpush1.msra.mxu0 %v211
    %333 = vmatprep.subr.mxu0 0.0
    %334 = vmatpush1.msra.mxu0 %v212
    %335 = vmatprep.subr.mxu0 0.0
    %336 = vmatpush1.msra.mxu0 %v213
    %337 = vmatprep.subr.mxu0 0.0
    %338 = vmatpush1.msra.mxu0 %v214
    %339 = vmatprep.subr.mxu0 0.0
    %340 = vmatpush1.msra.mxu0 %v215
    %341 = vmatprep.subr.mxu0 0.0
    %342 = vmatpush1.msra.mxu0 %v216
    %343 = vmatprep.subr.mxu0 0.0
    %344 = vmatpush1.msra.mxu0 %v217
    %345 = vmatprep.subr.mxu0 0.0
    %346 = vmatpush1.msra.mxu0 %v218
    %347 = vmatprep.mubr.f32.mxu0 %v67
    %348 = vmatmul.mubr.f32.gmra.mrb[0].mxu0 %v38
    %v349 = vpop.f32.mrb[0].mxu0
    %v350 = vadd.f32 0.0, %v349
    %v351 = vpop.f32.mrb[0].mxu0
    %352 = vmatprep.mubr.f32.mxu0 %v68
    %353 = vmatmul.mubr.f32.gmra.mrb[0].mxu0 %v39
    %v354 = vpop.f32.mrb[0].mxu0
    %v355 = vadd.f32 0.0, %v354
    %v356 = vpop.f32.mrb[0].mxu0
    %357 = vmatprep.mubr.f32.mxu0 %v69
    %358 = vmatmul.mubr.f32.gmra.mrb[0].mxu0 %v40
    %v359 = vpop.f32.mrb[0].mxu0
    %v360 = vadd.f32 0.0, %v359
    %v361 = vpop.f32.mrb[0].mxu0
    %362 = vmatprep.mubr.f32.mxu0 %v70
    %363 = vmatmul.mubr.f32.gmra.mrb[0].mxu0 %v41
    %v364 = vpop.f32.mrb[0].mxu0
    %v365 = vadd.f32 0.0, %v364
    %v366 = vpop.f32.mrb[0].mxu0
    %367 = vdwg.mxu0
    %368 = vmatprep.subr.mxu0 0.0
    %369 = vmatpush1.msra.mxu0 %v219
    %370 = vmatprep.subr.mxu0 0.0
    %371 = vmatpush1.msra.mxu0 %v220
    %372 = vmatprep.subr.mxu0 0.0
    %373 = vmatpush1.msra.mxu0 %v221
    %374 = vmatprep.subr.mxu0 0.0
    %375 = vmatpush1.msra.mxu0 %v222
    %376 = vmatprep.subr.mxu0 0.0
    %377 = vmatpush1.msra.mxu0 %v223
    %378 = vmatprep.subr.mxu0 0.0
    %379 = vmatpush1.msra.mxu0 %v224
    %380 = vmatprep.subr.mxu0 0.0
    %381 = vmatpush1.msra.mxu0 %v225
    %382 = vmatprep.subr.mxu0 0.0
    %383 = vmatpush1.msra.mxu0 %v226
    %384 = vmatprep.subr.mxu0 0.0
    %385 = vmatpush1.msra.mxu0 %v227
    %386 = vmatprep.subr.mxu0 0.0
    %387 = vmatpush1.msra.mxu0 %v228
    %388 = vmatprep.subr.mxu0 0.0
    %389 = vmatpush1.msra.mxu0 %v229
    %390 = vmatprep.subr.mxu0 0.0
    %391 = vmatpush1.msra.mxu0 %v230
    %392 = vmatprep.subr.mxu0 0.0
    %393 = vmatpush1.msra.mxu0 %v231
    %394 = vmatprep.subr.mxu0 0.0
    %395 = vmatpush1.msra.mxu0 %v232
    %396 = vmatprep.subr.mxu0 0.0
    %397 = vmatpush1.msra.mxu0 %v233
    %398 = vmatprep.subr.mxu0 0.0
    %399 = vmatpush1.msra.mxu0 %v234
    %400 = vmatprep.subr.mxu0 0.0
    %401 = vmatpush1.msra.mxu0 %v235
    %402 = vmatprep.subr.mxu0 0.0
    %403 = vmatpush1.msra.mxu0 %v236
    %404 = vmatprep.subr.mxu0 0.0
    %405 = vmatpush1.msra.mxu0 %v237
    %406 = vmatprep.subr.mxu0 0.0
    %407 = vmatpush1.msra.mxu0 %v238
    %408 = vmatprep.subr.mxu0 0.0
    %409 = vmatpush1.msra.mxu0 %v239
    %410 = vmatprep.subr.mxu0 0.0
    %411 = vmatpush1.msra.mxu0 %v240
    %412 = vmatprep.subr.mxu0 0.0
    %413 = vmatpush1.msra.mxu0 %v241
    %414 = vmatprep.subr.mxu0 0.0
    %415 = vmatpush1.msra.mxu0 %v242
    %416 = vmatprep.subr.mxu0 0.0
    %417 = vmatpush1.msra.mxu0 %v243
    %418 = vmatprep.subr.mxu0 0.0
    %419 = vmatpush1.msra.mxu0 %v244
    %420 = vmatprep.subr.mxu0 0.0
    %421 = vmatpush1.msra.mxu0 %v245
    %422 = vmatprep.subr.mxu0 0.0
    %423 = vmatpush1.msra.mxu0 %v246
    %424 = vmatprep.subr.mxu0 0.0
    %425 = vmatpush1.msra.mxu0 %v247
    %426 = vmatprep.subr.mxu0 0.0
    %427 = vmatpush1.msra.mxu0 %v248
    %428 = vmatprep.subr.mxu0 0.0
    %429 = vmatpush1.msra.mxu0 %v249
    %430 = vmatprep.subr.mxu0 0.0
    %431 = vmatpush1.msra.mxu0 %v250
    %432 = vmatprep.mubr.f32.mxu0 %v125
    %433 = vmatmul.mubr.f32.gmra.mrb[0].mxu0 %v96
    %v434 = vpop.f32.mrb[0].mxu0
    %v435 = vadd.f32 %v350, %v434
    %v436 = vpop.f32.mrb[0].mxu0
    %437 = vmatprep.mubr.f32.mxu0 %v126
    %438 = vmatmul.mubr.f32.gmra.mrb[0].mxu0 %v97
    %v439 = vpop.f32.mrb[0].mxu0
    %v440 = vadd.f32 %v355, %v439
    %v441 = vpop.f32.mrb[0].mxu0
    %442 = vmatprep.mubr.f32.mxu0 %v127
    %443 = vmatmul.mubr.f32.gmra.mrb[0].mxu0 %v98
    %v444 = vpop.f32.mrb[0].mxu0
    %v445 = vadd.f32 %v360, %v444
    %v446 = vpop.f32.mrb[0].mxu0
    %447 = vmatprep.mubr.f32.mxu0 %v128
    %448 = vmatmul.mubr.f32.gmra.mrb[0].mxu0 %v99
    %v449 = vpop.f32.mrb[0].mxu0
    %v450 = vadd.f32 %v365, %v449
    %v451 = vpop.f32.mrb[0].mxu0
    %452 = vdwg.mxu0
    %453 = vmatprep.subr.mxu0 0.0
    %454 = vmatpush1.msra.mxu0 %v251
    %455 = vmatprep.subr.mxu0 0.0
    %456 = vmatpush1.msra.mxu0 %v252
    %457 = vmatprep.subr.mxu0 0.0
    %458 = vmatpush1.msra.mxu0 %v253
    %459 = vmatprep.subr.mxu0 0.0
    %460 = vmatpush1.msra.mxu0 %v254
    %461 = vmatprep.subr.mxu0 0.0
    %462 = vmatpush1.msra.mxu0 %v255
    %463 = vmatprep.subr.mxu0 0.0
    %464 = vmatpush1.msra.mxu0 %v256
    %465 = vmatprep.subr.mxu0 0.0
    %466 = vmatpush1.msra.mxu0 %v257
    %467 = vmatprep.subr.mxu0 0.0
    %468 = vmatpush1.msra.mxu0 %v258
    %469 = vmatprep.subr.mxu0 0.0
    %470 = vmatpush1.msra.mxu0 %v259
    %471 = vmatprep.subr.mxu0 0.0
    %472 = vmatpush1.msra.mxu0 %v260
    %473 = vmatprep.subr.mxu0 0.0
    %474 = vmatpush1.msra.mxu0 %v261
    %475 = vmatprep.subr.mxu0 0.0
    %476 = vmatpush1.msra.mxu0 %v262
    %477 = vmatprep.subr.mxu0 0.0
    %478 = vmatpush1.msra.mxu0 %v263
    %479 = vmatprep.subr.mxu0 0.0
    %480 = vmatpush1.msra.mxu0 %v264
    %481 = vmatprep.subr.mxu0 0.0
    %482 = vmatpush1.msra.mxu0 %v265
    %483 = vmatprep.subr.mxu0 0.0
    %484 = vmatpush1.msra.mxu0 %v266
    %485 = vmatprep.subr.mxu0 0.0
    %486 = vmatpush1.msra.mxu0 %v267
    %487 = vmatprep.subr.mxu0 0.0
    %488 = vmatpush1.msra.mxu0 %v268
    %489 = vmatprep.subr.mxu0 0.0
    %490 = vmatpush1.msra.mxu0 %v269
    %491 = vmatprep.subr.mxu0 0.0
    %492 = vmatpush1.msra.mxu0 %v270
    %493 = vmatprep.subr.mxu0 0.0
    %494 = vmatpush1.msra.mxu0 %v271
    %495 = vmatprep.subr.mxu0 0.0
    %496 = vmatpush1.msra.mxu0 %v272
    %497 = vmatprep.subr.mxu0 0.0
    %498 = vmatpush1.msra.mxu0 %v273
    %499 = vmatprep.subr.mxu0 0.0
    %500 = vmatpush1.msra.mxu0 %v274
    %501 = vmatprep.subr.mxu0 0.0
    %502 = vmatpush1.msra.mxu0 %v275
    %503 = vmatprep.subr.mxu0 0.0
    %504 = vmatpush1.msra.mxu0 %v276
    %505 = vmatprep.subr.mxu0 0.0
    %506 = vmatpush1.msra.mxu0 %v277
    %507 = vmatprep.subr.mxu0 0.0
    %508 = vmatpush1.msra.mxu0 %v278
    %509 = vmatprep.subr.mxu0 0.0
    %510 = vmatpush1.msra.mxu0 %v279
    %511 = vmatprep.subr.mxu0 0.0
    %512 = vmatpush1.msra.mxu0 %v280
    %513 = vmatprep.subr.mxu0 0.0
    %514 = vmatpush1.msra.mxu0 %v281
    %515 = vmatprep.subr.mxu0 0.0
    %516 = vmatpush1.msra.mxu0 %v282
    %517 = vmatprep.mubr.f32.mxu0 %v183
    %518 = vmatmul.mubr.f32.gmra.mrb[0].mxu0 %v154
    %v519 = vpop.f32.mrb[0].mxu0
    %v520 = vadd.f32 %v435, %v519
    %v521 = vpop.f32.mrb[0].mxu0
    %522 = vmatprep.mubr.f32.mxu0 %v184
    %523 = vmatmul.mubr.f32.gmra.mrb[0].mxu0 %v155
    %v524 = vpop.f32.mrb[0].mxu0
    %v525 = vadd.f32 %v440, %v524
    %v526 = vpop.f32.mrb[0].mxu0
    %527 = vmatprep.mubr.f32.mxu0 %v185
    %528 = vmatmul.mubr.f32.gmra.mrb[0].mxu0 %v156
    %v529 = vpop.f32.mrb[0].mxu0
    %v530 = vadd.f32 %v445, %v529
    %v531 = vpop.f32.mrb[0].mxu0
    %532 = vmatprep.mubr.f32.mxu0 %v186
    %533 = vmatmul.mubr.f32.gmra.mrb[0].mxu0 %v157
    %v534 = vpop.f32.mrb[0].mxu0
    %v535 = vadd.f32 %v450, %v534
    %v536 = vpop.f32.mrb[0].mxu0
    %537 = vdwg.mxu0
    %v538 = vlaneseq
    %v539 = vshrl.u32 %v538, 7
    %v540 = vadd.s32 %v539, 8
    %vm541 = vcmp.lt.s32.totalorder %v13, 16
    %vm542 = vcmp.lt.s32.totalorder %v13, 32
    %v543 = vsel %vm542, 13, 11
    %v544 = vsel %vm541, 15, %v543
    %vm545 = vcmp.lt.s32.totalorder %v539, %v544
    %vm546 = vcmp.lt.s32.totalorder %v540, %v544
    %v547 = vsel %vm545, %v520, -1e+30
    %v548 = vsel %vm546, %v525, -1e+30
    %v549 = vsel %vm545, %v530, -1e+30
    %v550 = vsel %vm546, %v535, -1e+30
    %vm551 = vcmask 392192
    %v552 = vsel %vm551, %v547, -inf
    %v553 = vsel %vm551, %v548, -inf
    %v554 = vmax.f32 %v552, %v553
    %v555 = vrot.slane %v554, 4
    %v556 = vmax.f32 %v554, %v555
    %v557 = vrot.slane %v556, 2
    %v558 = vmax.f32 %v556, %v557
    %v559 = vrot.slane %v558, 1
    %v560 = vmax.f32 %v558, %v559
    %v561 = vsel %vm551, %v549, -inf
    %v562 = vsel %vm551, %v550, -inf
    %v563 = vmax.f32 %v561, %v562
    %v564 = vrot.slane %v563, 4
    %v565 = vmax.f32 %v563, %v564
    %v566 = vrot.slane %v565, 2
    %v567 = vmax.f32 %v565, %v566
    %v568 = vrot.slane %v567, 1
    %v569 = vmax.f32 %v567, %v568
    %v570 = vld [vmem:[%s1 + $0x300] sm:$0x1]
    %v571 = vlaneseq
    %v572 = vshrl.u32 %v571, 7
    %v573 = vsub.s32 0, %v572
    %v574 = vrot.slane %v570, %v573
    %v575 = vadd.f32 %v560, %v574
    %v576 = vadd.f32 %v569, %v574
    %v577 = vmax.f32 %v575, 0.0
    %v578 = vmax.f32 %v576, 0.0
    %v581 = vrot.slane %v578, 7
    %vm582 = vcmask 1041409
    %v583 = vsel %vm582, %v581, %v577
    %vm585 = vcmask 386048
    %586 = vst.msk [vmem:[#allocation2] sm:$0x3] %vm585, %v583
    // Predicated region
    $region10: #{feature_extractor.1} parent=1 // pred_check
      _
    $region11: #{feature_extractor.1} parent=1 // pred_check_branch
      %588 = sbr.rel (0) target = $region13
    $region12: #{feature_extractor.1} parent=1 // pred_region
      %s590 = ssub.s32 32, 32
      %591 = vsyncadd [#allocation3], %s590
      %s593 = sshll.u32 [#allocation2], 4
      %s594 = int_to_ptr.vmem [resolvable:$true] %s593
      %596 = dma.vmem_to_hbm [thread:$0]  %s594, 32, %s2, [#allocation3]
    $region13: #{feature_extractor.1} parent=1 // pred_fallthru
      _
    // Predicated region
    $region14: #{feature_extractor.1} parent=1 // pred_check
      _
    $region15: #{feature_extractor.1} parent=1 // pred_check_branch
      %598 = sbr.rel (0) target = $region17
    $region16: #{feature_extractor.1} parent=1 // pred_region
      %599 = dma.done [#allocation3], 32
    $region17: #{feature_extractor.1} parent=1 // pred_fallthru
      _
    %600 = vsyncpa [#allocation3], 1

</llo_original>
